<compile_context>
chip_gen: v5e
topology: v5e:2x2
jax: 0.10.0
libtpu: 0.0.40
codegen_flags: <defaults>
</compile_context>

<pallas_src>
import jax
import jax.numpy as jnp
from jax.experimental import pallas as pl
from jax.experimental.pallas import tpu as pltpu


def _round_up(n, m):
    return ((n + m - 1) // m) * m


def _linear_kernel(x_ref, w_ref, b_ref, o_ref):
    # x_ref: (TB, F) VMEM tile (double-buffered over the batch grid)
    # w_ref: (F, 1)  VMEM, resident (constant index_map across the grid)
    # b_ref: (1,)    f32 scalar in SMEM
    # o_ref: (TB, 1) f32 output tile
    acc = jnp.dot(x_ref[...], w_ref[...], preferred_element_type=jnp.float32)
    o_ref[...] = acc + b_ref[0]


def ann_conv_forward(x_nchw, w, b, *, tb=8192):
    """Forward of ANNConv.

    x_nchw: (B, 12, 3, 3) activation (f32 or bf16 — used as-is, no wrapper cast)
    w:      (1, 108) weight in torch nn.Linear layout
    b:      (1,) bias
    returns (B, 1) f32
    """
    B = x_nchw.shape[0]
    F = w.shape[1]
    # Row-major flatten == torch's .reshape on a contiguous NCHW tensor.
    x_flat = x_nchw.reshape(B, F)
    w_t = jnp.transpose(w).astype(x_flat.dtype)   # (108, 1), tiny cast, free
    b1 = b.reshape(1).astype(jnp.float32)         # (1,) scalar -> SMEM

    # --- batch tile selection -------------------------------------------------
    # Defensive rounding: block second-to-last dim must be a multiple of 8.
    tb = max(8, _round_up(tb, 8))
    b_ceil = _round_up(B, 8)
    TB = min(tb, b_ceil)
    # v7x: if the whole (large) batch would fit a single tile, split it in two so
    # the "parallel" batch axis has >= 2 grid steps to shard across both
    # TensorCores (each step still moves >= ~0.4 MiB, so step overhead stays
    # amortized).  No-op on v5e/v6e.
    if TB >= b_ceil and b_ceil >= 2048:
        TB = _round_up(pl.cdiv(b_ceil, 2), 8)

    # Ragged grid — no full-array pad/copy.  Pallas masks the last block's OOB
    # reads/writes; rows are independent so the pad region never leaks into the
    # first B output rows.
    grid = (pl.cdiv(B, TB),)

    out = pl.pallas_call(
        _linear_kernel,
        out_shape=jax.ShapeDtypeStruct((B, 1), jnp.float32),
        grid_spec=pltpu.PrefetchScalarGridSpec(
            num_scalar_prefetch=0,
            grid=grid,
            in_specs=[
                # activation: tiled over batch, F (=108) is the full last dim
                pl.BlockSpec((TB, F), lambda i: (i, 0)),
                # weight: constant block index -> DMA'd once, stays resident
                # (432 B; the default extra pipeline buffer is negligible,
                #  TODO(synk): pin with pipeline_mode=pl.Buffered(1) once swept)
                pl.BlockSpec((F, 1), lambda i: (0, 0)),
                # bias: scalar in SMEM, no VMEM tile / per-step DMA
                pl.BlockSpec(memory_space=pltpu.MemorySpace.SMEM),
            ],
            out_specs=pl.BlockSpec((TB, 1), lambda i: (i, 0)),
        ),
        compiler_params=pltpu.CompilerParams(
            dimension_semantics=("parallel",),   # v7x: shard batch over 2 TCs
            # VMEM is never the constraint for this kernel (<= ~8 MiB of
            # double-buffered tiles at TB=8192 even with 108->128 lane padding);
            # 32 MiB is simply explicit headroom on every generation.
            vmem_limit_bytes=32 * 1024 * 1024,
        ),
    )(x_flat, w_t, b1)

    return out


def init_params(key):
    """Deterministic init matching nn.Linear(108, 1) shapes (uniform +-1/sqrt(108))."""
    k_w, k_b = jax.random.split(key)
    bound = 1.0 / jnp.sqrt(108.0)
    w = jax.random.uniform(k_w, (1, 108), jnp.float32, -bound, bound)
    b = jax.random.uniform(k_b, (1,), jnp.float32, -bound, bound)
    return w, b


if __name__ == "__main__":
    key = jax.random.PRNGKey(0)
    k_x, k_x2, k_x3, k_p = jax.random.split(key, 4)

    w, b = init_params(k_p)

    # Small case consistent with the module: NCHW with C*H*W == 108 -> (B, 12, 3, 3).
    x = jax.random.normal(k_x, (2, 12, 3, 3), jnp.float32)
    out = jax.block_until_ready(ann_conv_forward(x, w, b))
    ref = x.reshape(2, -1) @ w.T + b
    assert out.shape == (2, 1)
    assert jnp.allclose(out, ref, atol=1e-5, rtol=1e-5)

    # Ragged multi-step grid path (B=520, tb=256 -> 3 grid steps, last one ragged).
    x2 = jax.random.normal(k_x2, (520, 12, 3, 3), jnp.float32)
    out2 = jax.block_until_ready(ann_conv_forward(x2, w, b, tb=256))
    ref2 = x2.reshape(520, -1) @ w.T + b
    assert out2.shape == (520, 1)
    assert jnp.allclose(out2, ref2, atol=1e-5, rtol=1e-5)

    # Dual-TC split path (B=2048 fits one default tile -> split into 2 steps).
    x3 = jax.random.normal(k_x3, (2048, 12, 3, 3), jnp.float32)
    out3 = jax.block_until_ready(ann_conv_forward(x3, w, b))
    ref3 = x3.reshape(2048, -1) @ w.T + b
    assert out3.shape == (2048, 1)
    assert jnp.allclose(out3, ref3, atol=1e-5, rtol=1e-5)

    print("KERNEL_OK")
</pallas_src>

<mosaic_0001>
module attributes {stable_mosaic.version = 11 : i64} {
  func.func @_linear_kernel(%arg0: i32, %arg1: memref<8x108xf32, #tpu.memory_space<vmem>>, %arg2: memref<108x1xf32, #tpu.memory_space<vmem>>, %arg3: memref<1xf32, #tpu.memory_space<smem>>, %arg4: memref<8x1xf32, #tpu.memory_space<vmem>>) attributes {dimension_semantics = [#tpu.dimension_semantics<parallel>], iteration_bounds = array<i64: 1>, scalar_prefetch = 0 : i64, scratch_operands = 0 : i64, tpu.core_type = #tpu.core_type<tc>, window_params = [{transform_indices = @transform_0, window_bounds = array<i64: 8, 108>}, {pipeline_mode = #tpu.pipeline_mode<synchronous>, transform_indices = @transform_1, window_bounds = array<i64: 108, 1>}, {transform_indices = @transform_2, window_bounds = array<i64: 1>}, {transform_indices = @transform_3, window_bounds = array<i64: 8, 1>}]} {
    %c0 = arith.constant 0 : index
    %c0_0 = arith.constant 0 : index
    %0 = vector.load %arg1[%c0, %c0_0] : memref<8x108xf32, #tpu.memory_space<vmem>>, vector<8x108xf32>
    %c0_1 = arith.constant 0 : index
    %c0_2 = arith.constant 0 : index
    %1 = vector.load %arg2[%c0_1, %c0_2] : memref<108x1xf32, #tpu.memory_space<vmem>>, vector<108x1xf32>
    %cst = arith.constant dense<0.000000e+00> : vector<8x1xf32>
    %2 = tpu.matmul %0, %1, %cst {dimension_numbers = #tpu.dot_dimension_numbers<[1], [0], [0], [1], [0, 0, 1, 1], [], []>} : vector<8x108xf32>, vector<108x1xf32>, vector<8x1xf32> -> vector<8x1xf32>
    %c0_3 = arith.constant 0 : index
    %3 = memref.load %arg3[%c0_3] : memref<1xf32, #tpu.memory_space<smem>>
    %4 = vector.broadcast %3 : f32 to vector<8x1xf32>
    %5 = arith.addf %2, %4 : vector<8x1xf32>
    %c0_4 = arith.constant 0 : index
    %c0_5 = arith.constant 0 : index
    %6 = vector.load %arg4[%c0_4, %c0_5] : memref<8x1xf32, #tpu.memory_space<vmem>>, vector<8x1xf32>
    tpu.vector_store %arg4[%c0_4, %c0_5], %5 {strides = array<i32>} : memref<8x1xf32, #tpu.memory_space<vmem>>, vector<8x1xf32>,
    return
  }
  func.func @transform_0(%arg0: i32) -> (i32, i32) {
    %c0_i32 = arith.constant 0 : i32
    %c0_i32_0 = arith.constant 0 : i32
    return %arg0, %c0_i32 : i32, i32
  }
  func.func @transform_1(%arg0: i32) -> (i32, i32) {
    %c0_i32 = arith.constant 0 : i32
    %c0_i32_0 = arith.constant 0 : i32
    %c0_i32_1 = arith.constant 0 : i32
    return %c0_i32, %c0_i32_0 : i32, i32
  }
  func.func @transform_2(%arg0: i32) -> i32 {
    %c0_i32 = arith.constant 0 : i32
    %c0_i32_0 = arith.constant 0 : i32
    return %c0_i32 : i32
  }
  func.func @transform_3(%arg0: i32) -> (i32, i32) {
    %c0_i32 = arith.constant 0 : i32
    %c0_i32_0 = arith.constant 0 : i32
    return %arg0, %c0_i32 : i32, i32
  }
}

</mosaic_0001>

<llo_original>
// kernel: tpu_custom_call.1
$region0: #{tpu_custom_call.1}
  #allocation0 [shape = 'u32[]', space=smem, size = 0x4, offset = 0x4, fixed_abs, tag = 'smem constant byte address 0x4 - core index']
  #allocation1 [shape = 'u32[72,128]{1,0:T(1,128)}', space=vmem, size = 0x9000, scoped, tag = 'internal scratch']
  #allocation2 [shape = 'f32[1]{0:T(128)S(6)}', space=smem, size = 0x200, scoped, tag = 'scoped memory for tpu_custom_call.1']
  %s0 = inlined_call_operand.vmem [shape: f32[2,108], index: 0, kind: input, shape index: {}]
  %s1 = inlined_call_operand.vmem [shape: f32[108,1], index: 1, kind: input, shape index: {}]
  %s2 = inlined_call_operand.<no memory space> [shape: f32[1], index: 2, kind: input, shape index: {}]
  %s3 = inlined_call_operand.vmem [shape: f32[2,1], index: 3, kind: output, shape index: {}]
  %s4 = sld [smem:[#allocation0]]
  $region52: #{tpu_custom_call.1} parent=0
    _
  %s6 = ssub.s32 1, %s4
  %s7 = scalar_select 0, %s6, %s4
  %8 = sst [smem:[#allocation2]] %s2
  $region1: #{tpu_custom_call.1} parent=0
    #allocation3 [shape = 'u8[4096]{0}', space=vmem, size = 0x1000, scoped, tag = 'output window, operand 0, single buffered']
    // Predicated region
    $region2: #{tpu_custom_call.1} parent=1 // pred_check
      _
    $region3: #{tpu_custom_call.1} parent=1 // pred_check_branch
      %10 = sbr.rel (0) target = $region5
    $region4: #{tpu_custom_call.1} parent=1 // pred_region
      _
    $region5: #{tpu_custom_call.1} parent=1 // pred_fallthru
      _
    // Predicated region
    $region6: #{tpu_custom_call.1} parent=1 // pred_check
      _
    $region7: #{tpu_custom_call.1} parent=1 // pred_check_branch
      %12 = sbr.rel (0) target = $region9
    $region8: #{tpu_custom_call.1} parent=1 // pred_region
      _
    $region9: #{tpu_custom_call.1} parent=1 // pred_fallthru
      _
    // Predicated region
    $region10: #{tpu_custom_call.1} parent=1 // pred_check
      _
    $region11: #{tpu_custom_call.1} parent=1 // pred_check_branch
      %14 = sbr.rel (0) target = $region13
    $region12: #{tpu_custom_call.1} parent=1 // pred_region
      _
    $region13: #{tpu_custom_call.1} parent=1 // pred_fallthru
      _
    %v15 = vld [vmem:[%s0] sm:$0xff]
    %v16 = vld [vmem:[%s1] sm:$0xff]
    %v17 = vld [vmem:[%s1 + $0x8] sm:$0xff]
    %v18 = vld [vmem:[%s1 + $0x10] sm:$0xff]
    %v19 = vld [vmem:[%s1 + $0x18] sm:$0xff]
    %v20 = vld [vmem:[%s1 + $0x20] sm:$0xff]
    %v21 = vld [vmem:[%s1 + $0x28] sm:$0xff]
    %v22 = vld [vmem:[%s1 + $0x30] sm:$0xff]
    %v23 = vld [vmem:[%s1 + $0x38] sm:$0xff]
    %v24 = vld [vmem:[%s1 + $0x40] sm:$0xff]
    %v25 = vld [vmem:[%s1 + $0x48] sm:$0xff]
    %v26 = vld [vmem:[%s1 + $0x50] sm:$0xff]
    %v27 = vld [vmem:[%s1 + $0x58] sm:$0xff]
    %v28 = vld [vmem:[%s1 + $0x60] sm:$0xff]
    %v29 = vld [vmem:[%s1 + $0x68] sm:$0xf]
    %s30 = sld [smem:[#allocation2]]
    %v31 = vstv %s30
    %vm32 = vcmask 883712
    %v34 = vsel %vm32, %v15, 0
    %vm36 = vcmask 1043456
    %v38 = vsel %vm36, %v29, 0
    %40 = vmatpush.msra.mxu0 0.0
    %41 = vmatpush.msra.mxu0 0.0
    %42 = vmatpush.msra.mxu0 %v38
    %43 = vmatpush.msra.mxu0 %v28
    %44 = vmatpush.msra.mxu0 %v27
    %45 = vmatpush.msra.mxu0 %v26
    %46 = vmatpush.msra.mxu0 %v25
    %47 = vmatpush.msra.mxu0 %v24
    %48 = vmatpush.msra.mxu0 %v23
    %49 = vmatpush.msra.mxu0 %v22
    %50 = vmatpush.msra.mxu0 %v21
    %51 = vmatpush.msra.mxu0 %v20
    %52 = vmatpush.msra.mxu0 %v19
    %53 = vmatpush.msra.mxu0 %v18
    %54 = vmatpush.msra.mxu0 %v17
    %55 = vmatpush.msra.mxu0 %v16
    %56 = vmatmul.f32.gmra.mxu0 %v34
    %v57 = vpop.f32.mrf.mxu0
    %v58 = vadd.f32 %v31, %v57
    %59 = vdwg.mxu0
    %vm60 = vcmask 7168
    %61 = vst.msk [vmem:[#allocation3] sm:$0xff] %vm60, %v58
    // Predicated region
    $region14: #{tpu_custom_call.1} parent=1 // pred_check
      _
    $region15: #{tpu_custom_call.1} parent=1 // pred_check_branch
      %63 = sbr.rel (0) target = $region17
    $region16: #{tpu_custom_call.1} parent=1 // pred_region
      // Predicated region
      $region18: #{tpu_custom_call.1} parent=16 // pred_check
        _
      $region19: #{tpu_custom_call.1} parent=16 // pred_check_branch
        %65 = sbr.rel (0) target = $region21
      $region20: #{tpu_custom_call.1} parent=16 // pred_region
        // Predicated region
        $region22: #{tpu_custom_call.1} parent=20 // pred_check
          _
        $region23: #{tpu_custom_call.1} parent=20 // pred_check_branch
          %67 = sbr.rel target = $region25
        $region24: #{tpu_custom_call.1} parent=20 // pred_region
          // Predicated region
          $region37: #{tpu_custom_call.1} parent=24 // pred_check
            _
          $region38: #{tpu_custom_call.1} parent=24 // pred_check_branch
            %83 = sbr.rel (0) target = $region40
          $region39: #{tpu_custom_call.1} parent=24 // pred_region
            %s85 = ssub.s32 4, 1
            loop: start=0, step=1, limit=1
            $region41: #{tpu_custom_call.1} parent=39 // loop_pre_header
              _
            $region42: #{tpu_custom_call.1} parent=39 // loop_header
              %s87 = sphi 0, %s91
              %p88 = scmp.ge.s32.totalorder %s87, 1
              %s92 = sphi [#allocation3], [#allocation3]
              %s93 = sphi %s3, %s3
            $region43: #{tpu_custom_call.1} parent=39 // loop_header_branch
              %90 = sbr.rel (%p88) target = $region47
            $region44: #{tpu_custom_call.1} parent=39 // loop_body
              %v94 = vld [vmem:[%s92] sm:%s85]
              %95 = vst [vmem:[%s93] sm:%s85] %v94
            $region45: #{tpu_custom_call.1} parent=39 // loop_footer
              %s91 = sadd.s32 1, %s87
            $region46: #{tpu_custom_call.1} parent=39 // loop_footer_branch
              %86 = sbr.rel target = $region42
            $region47: #{tpu_custom_call.1} parent=39 // loop_exit
              _
          $region40: #{tpu_custom_call.1} parent=24 // pred_fallthru
            _
        $region25: #{tpu_custom_call.1} parent=20 // pred_fallthru
          _
        // Predicated region
        $region26: #{tpu_custom_call.1} parent=20 // pred_check
          _
        $region27: #{tpu_custom_call.1} parent=20 // pred_check_branch
          %69 = sbr.rel (0) target = $region29
        $region28: #{tpu_custom_call.1} parent=20 // pred_region
          %s71 = ssub.s32 4, 1
          loop: start=0, step=1, limit=1
          $region30: #{tpu_custom_call.1} parent=28 // loop_pre_header
            _
          $region31: #{tpu_custom_call.1} parent=28 // loop_header
            %s73 = sphi 0, %s77
            %p74 = scmp.ge.s32.totalorder %s73, 1
            %s78 = sphi [#allocation3], [#allocation3]
            %s79 = sphi %s3, %s3
          $region32: #{tpu_custom_call.1} parent=28 // loop_header_branch
            %76 = sbr.rel (%p74) target = $region36
          $region33: #{tpu_custom_call.1} parent=28 // loop_body
            %v80 = vld [vmem:[%s78] sm:%s71]
            %81 = vst [vmem:[%s79] sm:%s71] %v80
          $region34: #{tpu_custom_call.1} parent=28 // loop_footer
            %s77 = sadd.s32 1, %s73
          $region35: #{tpu_custom_call.1} parent=28 // loop_footer_branch
            %72 = sbr.rel target = $region31
          $region36: #{tpu_custom_call.1} parent=28 // loop_exit
            _
        $region29: #{tpu_custom_call.1} parent=20 // pred_fallthru
          _
      $region21: #{tpu_custom_call.1} parent=16 // pred_fallthru
        _
      %96 = vnop
    $region17: #{tpu_custom_call.1} parent=1 // pred_fallthru
      _
    // Predicated region
    $region48: #{tpu_custom_call.1} parent=1 // pred_check
      _
    $region49: #{tpu_custom_call.1} parent=1 // pred_check_branch
      %98 = sbr.rel (0) target = $region51
    $region50: #{tpu_custom_call.1} parent=1 // pred_region
      _
    $region51: #{tpu_custom_call.1} parent=1 // pred_fallthru
      _

</llo_original>
